<compile_context>
chip_gen: v7x
topology: tpu7x:2x2x1
jax: 0.10.0
libtpu: 0.0.40
codegen_flags: <defaults>
</compile_context>

<pallas_src>
import jax
import jax.numpy as jnp
from jax import lax
from jax.experimental import pallas as pl
from jax.experimental.pallas import tpu as pltpu


def _round_up(n, m):
    return ((n + m - 1) // m) * m


def _vmem_capacity_bytes(default=64 * 1024 * 1024):
    """Chip VMEM capacity (v7x: 64 MiB, v5e/v6e: 128 MiB); safe fallback."""
    try:
        info = pltpu.get_tpu_info()
        return int(getattr(info, "vmem_capacity_bytes", default))
    except Exception:
        return default


def firstnet_kernel(x_ref, w1_ref, b1_ref, w2_ref, b2_ref, w3_ref, b3_ref, o_ref):
    # x arrives as f32 tiles; cast to bf16 on the VPU inside the kernel
    # (halves HBM traffic on x vs a separate wrapper-side cast pass).
    xb = x_ref[...].astype(jnp.bfloat16)                          # (TB, F) bf16

    # Layer 1: Linear(F, 256) + ReLU      (bf16 MXU matmul, f32 accumulate)
    h1 = jnp.dot(xb, w1_ref[...], preferred_element_type=jnp.float32)
    h1 = jnp.maximum(h1 + b1_ref[...], 0.0)                       # (TB, 256) f32
    # Dropout(0.5) -> identity at inference.

    # Layer 2: Linear(256, 128) + ReLU
    h2 = jnp.dot(h1.astype(jnp.bfloat16), w2_ref[...],
                 preferred_element_type=jnp.float32)
    h2 = jnp.maximum(h2 + b2_ref[...], 0.0)                       # (TB, 128) f32
    # Dropout(0.5) -> identity at inference.

    # Layer 3: Linear(128, 1) + Sigmoid.
    # Contract the last dims: (1,128) . (TB,128) -> (1,TB) lane-dense row.
    # This avoids an N=1 matmul, a materialized transpose of h2, and masked
    # single-lane (TB,1) stores.
    logits = lax.dot_general(
        w3_ref[...], h2.astype(jnp.bfloat16),
        dimension_numbers=(((1,), (1,)), ((), ())),
        preferred_element_type=jnp.float32)                       # (1, TB)
    logits = logits + b3_ref[0, 0]                                # SMEM scalar bias
    # Exact sigmoid: exp + exact reciprocal both on the EUP (slot has slack;
    # approx=True bought no wall-clock, only error on output probabilities).
    o_ref[0] = pl.reciprocal(1.0 + jnp.exp(-logits), approx=False)


def _pick_batch_tile(B, F, H1, H2, vmem_limit_bytes, block_batch):
    """Largest lane-aligned batch tile that fits the VMEM budget.

    Generation-aware: the budget is derived from the chip's real VMEM capacity,
    so a tile that fits v6e's 128 MiB is not blindly reused on v7x's 64 MiB.
    Forces >= 2 grid steps when B >= 256 so v7x's two TensorCores both get work.
    """
    # Per-batch-row bytes of pipelined / intermediate state:
    #   f32 x tile (x2 double buffer) + bf16 x copy + f32/bf16 h1 + f32/bf16 h2
    #   + f32 output row (x2 double buffer).
    per_row = 2 * F * 4 + F * 2 + H1 * 6 + H2 * 6 + 2 * 4
    # Resident weights/biases (double-buffered worst case) + slack.
    resident = 2 * (F * H1 * 2 + H1 * 4 + H1 * H2 * 2 + H2 * 4 + H2 * 2) + 512 * 1024
    budget = int(vmem_limit_bytes * 0.75) - resident
    tb_fit = max(128, (budget // max(per_row, 1)) // 128 * 128)
    max_tb = max(128, min(block_batch, tb_fit))
    if B >= 256:
        # >= 2 grid steps so the "parallel" axis shards across both v7x TCs
        # (negligible extra per-step overhead on single-TC v5e/v6e).
        max_tb = min(max_tb, _round_up(pl.cdiv(B, 2), 128))
    if B <= max_tb:
        return B            # single exact tile: no pad, no partial block
    return max_tb           # multiple of 128; boundary tile clipped by Pallas


def firstnet_forward(x, params, block_batch=4096):
    """Fused FirstNet forward. Returns (B, 1) float32, like the PyTorch module."""
    w1, b1, w2, b2, w3, b3 = params
    B, F = x.shape
    H1 = w1.shape[1]
    H2 = w2.shape[1]

    vmem_cap = _vmem_capacity_bytes()
    # Raise the scoped VMEM limit toward the chip's capacity (with headroom)
    # instead of letting the 32 MiB default constrain tiling.
    vmem_limit = max(32 * 1024 * 1024, min(int(vmem_cap * 0.9), 112 * 1024 * 1024))

    TB = _pick_batch_tile(B, F, H1, H2, vmem_limit, block_batch)
    num_tiles = pl.cdiv(B, TB)

    cost = pl.CostEstimate(
        flops=2 * B * (F * H1 + H1 * H2 + H2),
        transcendentals=B,  # one exp per output element (sigmoid)
        bytes_accessed=B * F * 4 + B * 4
        + (F * H1 + H1 * H2 + H2) * 2 + (H1 + H2 + 1) * 4,
    )

    # NOTE: pipeline_mode=pl.Buffered(1) on the constant-index weight specs would
    # halve their resident VMEM footprint; omitted since the weights are small
    # relative to the activation tile and support varies across jax versions.
    out = pl.pallas_call(
        firstnet_kernel,
        out_shape=jax.ShapeDtypeStruct((num_tiles, 1, TB), jnp.float32),
        grid_spec=pltpu.PrefetchScalarGridSpec(
            num_scalar_prefetch=0,
            grid=(num_tiles,),
            in_specs=[
                pl.BlockSpec((TB, F), lambda i: (i, 0)),            # x: streamed f32 tiles
                pl.BlockSpec((F, H1), lambda i: (0, 0)),            # w1: VMEM-resident
                pl.BlockSpec((1, H1), lambda i: (0, 0)),            # b1
                pl.BlockSpec((H1, H2), lambda i: (0, 0)),           # w2
                pl.BlockSpec((1, H2), lambda i: (0, 0)),            # b2
                pl.BlockSpec((1, H2), lambda i: (0, 0)),            # w3 (row form)
                pl.BlockSpec(memory_space=pltpu.MemorySpace.SMEM),  # b3 scalar
            ],
            out_specs=pl.BlockSpec((1, 1, TB), lambda i: (i, 0, 0)),
        ),
        compiler_params=pltpu.CompilerParams(
            dimension_semantics=("parallel",),     # megacore-shardable batch axis
            vmem_limit_bytes=vmem_limit,
        ),
        cost_estimate=cost,
    )(x.astype(jnp.float32), w1, b1, w2, b2, w3, b3)

    # Lane-dense (num_tiles, 1, TB) rows -> (B, 1); garbage lanes from a clipped
    # boundary tile are discarded here. Matches y.squeeze(1).view(-1, 1).
    return out.reshape(num_tiles * TB)[:B].reshape(B, 1)


def init_params(key, input_dim):
    """PyTorch nn.Linear-style init (uniform +-1/sqrt(fan_in)); MXU operands in bf16."""
    def linear(k, fan_in, fan_out):
        k_w, k_b = jax.random.split(k)
        bound = 1.0 / jnp.sqrt(fan_in)
        w = jax.random.uniform(k_w, (fan_in, fan_out), jnp.float32, -bound, bound)
        b = jax.random.uniform(k_b, (1, fan_out), jnp.float32, -bound, bound)
        return w, b

    k1, k2, k3 = jax.random.split(key, 3)
    w1, b1 = linear(k1, input_dim, 256)
    w2, b2 = linear(k2, 256, 128)
    w3, b3 = linear(k3, 128, 1)
    return (w1.astype(jnp.bfloat16), b1,
            w2.astype(jnp.bfloat16), b2,
            w3.T.astype(jnp.bfloat16),        # stored as (1, 128) row
            b3.reshape(1, 1))                 # SMEM scalar


def reference_forward(x, params):
    """Pure-JAX reference using the same bf16 MXU inputs / f32 accumulation."""
    w1, b1, w2, b2, w3_row, b3 = params
    xb = x.astype(jnp.bfloat16)
    h1 = jnp.maximum(jnp.dot(xb, w1, preferred_element_type=jnp.float32) + b1, 0.0)
    h2 = jnp.maximum(jnp.dot(h1.astype(jnp.bfloat16), w2,
                             preferred_element_type=jnp.float32) + b2, 0.0)
    logits = jnp.dot(h2.astype(jnp.bfloat16), w3_row.T,
                     preferred_element_type=jnp.float32) + b3
    return jax.nn.sigmoid(logits)


if __name__ == "__main__":
    key = jax.random.PRNGKey(0)
    k_x, k_p = jax.random.split(key)

    batch, input_dim = 8, 32
    x = jax.random.normal(k_x, (batch, input_dim), jnp.float32)
    params = init_params(k_p, input_dim)

    y = firstnet_forward(x, params)
    y = jax.block_until_ready(y)

    y_ref = reference_forward(x, params)
    assert y.shape == (batch, 1), y.shape
    max_err = float(jnp.max(jnp.abs(y - y_ref)))
    assert max_err < 5e-3, f"mismatch vs reference, max abs err = {max_err}"

    print("KERNEL_OK")
</pallas_src>

<mosaic_0001>
module attributes {stable_mosaic.version = 11 : i64} {
  func.func @firstnet_kernel(%arg0: i32, %arg1: memref<8x32xf32, #tpu.memory_space<vmem>>, %arg2: memref<32x256xbf16, #tpu.memory_space<vmem>>, %arg3: memref<1x256xf32, #tpu.memory_space<vmem>>, %arg4: memref<256x128xbf16, #tpu.memory_space<vmem>>, %arg5: memref<1x128xf32, #tpu.memory_space<vmem>>, %arg6: memref<1x128xbf16, #tpu.memory_space<vmem>>, %arg7: memref<1x1xf32, #tpu.memory_space<smem>>, %arg8: memref<1x1x8xf32, #tpu.memory_space<vmem>>) attributes {dimension_semantics = [#tpu.dimension_semantics<parallel>], iteration_bounds = array<i64: 1>, scalar_prefetch = 0 : i64, scratch_operands = 0 : i64, tpu.core_type = #tpu.core_type<tc>, window_params = [{transform_indices = @transform_0, window_bounds = array<i64: 8, 32>}, {pipeline_mode = #tpu.pipeline_mode<synchronous>, transform_indices = @transform_1, window_bounds = array<i64: 32, 256>}, {pipeline_mode = #tpu.pipeline_mode<synchronous>, transform_indices = @transform_2, window_bounds = array<i64: 1, 256>}, {pipeline_mode = #tpu.pipeline_mode<synchronous>, transform_indices = @transform_3, window_bounds = array<i64: 256, 128>}, {pipeline_mode = #tpu.pipeline_mode<synchronous>, transform_indices = @transform_4, window_bounds = array<i64: 1, 128>}, {pipeline_mode = #tpu.pipeline_mode<synchronous>, transform_indices = @transform_5, window_bounds = array<i64: 1, 128>}, {transform_indices = @transform_6, window_bounds = array<i64: 1, 1>}, {transform_indices = @transform_7, window_bounds = array<i64: 1, 1, 8>}]} {
    %c0 = arith.constant 0 : index
    %c0_0 = arith.constant 0 : index
    %0 = vector.load %arg1[%c0, %c0_0] : memref<8x32xf32, #tpu.memory_space<vmem>>, vector<8x32xf32>
    %1 = arith.truncf %0 : vector<8x32xf32> to vector<8x32xbf16>
    %c0_1 = arith.constant 0 : index
    %c0_2 = arith.constant 0 : index
    %2 = vector.load %arg2[%c0_1, %c0_2] : memref<32x256xbf16, #tpu.memory_space<vmem>>, vector<32x256xbf16>
    %cst = arith.constant dense<0.000000e+00> : vector<8x256xf32>
    %3 = tpu.matmul %1, %2, %cst {dimension_numbers = #tpu.dot_dimension_numbers<[1], [0], [0], [1], [0, 0, 1, 1], [], []>} : vector<8x32xbf16>, vector<32x256xbf16>, vector<8x256xf32> -> vector<8x256xf32>
    %c0_3 = arith.constant 0 : index
    %c0_4 = arith.constant 0 : index
    %4 = vector.load %arg3[%c0_3, %c0_4] : memref<1x256xf32, #tpu.memory_space<vmem>>, vector<1x256xf32>
    %5 = vector.broadcast %4 : vector<1x256xf32> to vector<8x256xf32>
    %6 = arith.addf %3, %5 : vector<8x256xf32>
    %cst_5 = arith.constant 0.000000e+00 : f32
    %7 = vector.broadcast %cst_5 : f32 to vector<8x256xf32>
    %8 = arith.maximumf %6, %7 : vector<8x256xf32>
    %9 = arith.truncf %8 : vector<8x256xf32> to vector<8x256xbf16>
    %c0_6 = arith.constant 0 : index
    %c0_7 = arith.constant 0 : index
    %10 = vector.load %arg4[%c0_6, %c0_7] : memref<256x128xbf16, #tpu.memory_space<vmem>>, vector<256x128xbf16>
    %cst_8 = arith.constant dense<0.000000e+00> : vector<8x128xf32>
    %11 = tpu.matmul %9, %10, %cst_8 {dimension_numbers = #tpu.dot_dimension_numbers<[1], [0], [0], [1], [0, 0, 1, 1], [], []>} : vector<8x256xbf16>, vector<256x128xbf16>, vector<8x128xf32> -> vector<8x128xf32>
    %c0_9 = arith.constant 0 : index
    %c0_10 = arith.constant 0 : index
    %12 = vector.load %arg5[%c0_9, %c0_10] : memref<1x128xf32, #tpu.memory_space<vmem>>, vector<1x128xf32>
    %13 = vector.broadcast %12 : vector<1x128xf32> to vector<8x128xf32>
    %14 = arith.addf %11, %13 : vector<8x128xf32>
    %cst_11 = arith.constant 0.000000e+00 : f32
    %15 = vector.broadcast %cst_11 : f32 to vector<8x128xf32>
    %16 = arith.maximumf %14, %15 : vector<8x128xf32>
    %c0_12 = arith.constant 0 : index
    %c0_13 = arith.constant 0 : index
    %17 = vector.load %arg6[%c0_12, %c0_13] : memref<1x128xbf16, #tpu.memory_space<vmem>>, vector<1x128xbf16>
    %18 = arith.truncf %16 : vector<8x128xf32> to vector<8x128xbf16>
    %cst_14 = arith.constant dense<0.000000e+00> : vector<1x8xf32>
    %19 = tpu.matmul %17, %18, %cst_14 {dimension_numbers = #tpu.dot_dimension_numbers<[1], [1], [0], [0], [0, 0, 1, 0], [], []>} : vector<1x128xbf16>, vector<8x128xbf16>, vector<1x8xf32> -> vector<1x8xf32>
    %c0_15 = arith.constant 0 : index
    %c0_16 = arith.constant 0 : index
    %20 = memref.load %arg7[%c0_15, %c0_16] : memref<1x1xf32, #tpu.memory_space<smem>>
    %21 = vector.broadcast %20 : f32 to vector<1x8xf32>
    %22 = arith.addf %19, %21 : vector<1x8xf32>
    %cst_17 = arith.constant 0.000000e+00 : f32
    %23 = vector.broadcast %cst_17 : f32 to vector<1x8xf32>
    %24 = arith.subf %23, %22 : vector<1x8xf32>
    %25 = math.exp %24 : vector<1x8xf32>
    %cst_18 = arith.constant 1.000000e+00 : f32
    %26 = vector.broadcast %cst_18 : f32 to vector<1x8xf32>
    %27 = arith.addf %26, %25 : vector<1x8xf32>
    %28 = tpu.reciprocal %27 : vector<1x8xf32> -> vector<1x8xf32>
    %c0_19 = arith.constant 0 : index
    %c0_20 = arith.constant 0 : index
    %c0_21 = arith.constant 0 : index
    %29 = vector.load %arg8[%c0_19, %c0_20, %c0_21] : memref<1x1x8xf32, #tpu.memory_space<vmem>>, vector<1x1x8xf32>
    %30 = vector.shape_cast %29 : vector<1x1x8xf32> to vector<1x8xf32>
    %31 = vector.shape_cast %28 : vector<1x8xf32> to vector<1x1x8xf32>
    tpu.vector_store %arg8[%c0_19, %c0_20, %c0_21], %31 {strides = array<i32>} : memref<1x1x8xf32, #tpu.memory_space<vmem>>, vector<1x1x8xf32>,
    return
  }
  func.func @transform_0(%arg0: i32) -> (i32, i32) {
    %c0_i32 = arith.constant 0 : i32
    %c0_i32_0 = arith.constant 0 : i32
    return %arg0, %c0_i32 : i32, i32
  }
  func.func @transform_1(%arg0: i32) -> (i32, i32) {
    %c0_i32 = arith.constant 0 : i32
    %c0_i32_0 = arith.constant 0 : i32
    %c0_i32_1 = arith.constant 0 : i32
    return %c0_i32, %c0_i32_0 : i32, i32
  }
  func.func @transform_2(%arg0: i32) -> (i32, i32) {
    %c0_i32 = arith.constant 0 : i32
    %c0_i32_0 = arith.constant 0 : i32
    %c0_i32_1 = arith.constant 0 : i32
    return %c0_i32, %c0_i32_0 : i32, i32
  }
  func.func @transform_3(%arg0: i32) -> (i32, i32) {
    %c0_i32 = arith.constant 0 : i32
    %c0_i32_0 = arith.constant 0 : i32
    %c0_i32_1 = arith.constant 0 : i32
    return %c0_i32, %c0_i32_0 : i32, i32
  }
  func.func @transform_4(%arg0: i32) -> (i32, i32) {
    %c0_i32 = arith.constant 0 : i32
    %c0_i32_0 = arith.constant 0 : i32
    %c0_i32_1 = arith.constant 0 : i32
    return %c0_i32, %c0_i32_0 : i32, i32
  }
  func.func @transform_5(%arg0: i32) -> (i32, i32) {
    %c0_i32 = arith.constant 0 : i32
    %c0_i32_0 = arith.constant 0 : i32
    %c0_i32_1 = arith.constant 0 : i32
    return %c0_i32, %c0_i32_0 : i32, i32
  }
  func.func @transform_6(%arg0: i32) -> (i32, i32) {
    %c0_i32 = arith.constant 0 : i32
    %c0_i32_0 = arith.constant 0 : i32
    %c0_i32_1 = arith.constant 0 : i32
    return %c0_i32, %c0_i32_0 : i32, i32
  }
  func.func @transform_7(%arg0: i32) -> (i32, i32, i32) {
    %c0_i32 = arith.constant 0 : i32
    %c0_i32_0 = arith.constant 0 : i32
    %c0_i32_1 = arith.constant 0 : i32
    return %arg0, %c0_i32, %c0_i32_0 : i32, i32, i32
  }
}

</mosaic_0001>

<llo_original>
// kernel: tpu_custom_call.1
$region0: #{tpu_custom_call.1}
  #allocation0 [shape = 'u32[]', space=smem, size = 0x4, offset = 0x4, fixed_abs, tag = 'smem constant byte address 0x4 - core index']
  #allocation1 [shape = 'u32[144,128]{1,0:T(1,128)}', space=vmem, size = 0x12000, scoped, tag = 'internal scratch']
  #allocation2 [shape = 'f32[1,1]{1,0:T(1,128)S(6)}', space=smem, size = 0x200, scoped, tag = 'scoped memory for tpu_custom_call.1']
  %s0 = inlined_call_operand.hbm [shape: f32[8,32], index: 0, kind: input, shape index: {}]
  %s1 = inlined_call_operand.hbm [shape: bf16[32,256], index: 1, kind: input, shape index: {}]
  %s2 = inlined_call_operand.vmem [shape: f32[1,256], index: 2, kind: input, shape index: {}]
  %s3 = inlined_call_operand.hbm [shape: bf16[256,128], index: 3, kind: input, shape index: {}]
  %s4 = inlined_call_operand.vmem [shape: f32[1,128], index: 4, kind: input, shape index: {}]
  %s5 = inlined_call_operand.vmem [shape: bf16[1,128], index: 5, kind: input, shape index: {}]
  %s6 = inlined_call_operand.<no memory space> [shape: f32[1,1], index: 6, kind: input, shape index: {}]
  %s7 = inlined_call_operand.hbm [shape: f32[1,1,8], index: 7, kind: output, shape index: {}]
  %s8 = sld [smem:[#allocation0]]
  $region50: #{tpu_custom_call.1} parent=0
    _
  %s10 = ssub.s32 1, %s8
  %s11 = scalar_select 0, %s10, %s8
  %12 = sst [smem:[#allocation2]] %s6
  $region1: #{tpu_custom_call.1} parent=0
    #allocation3 [shape = 'u8[4096]{0}', space=vmem, size = 0x1000, scoped, tag = 'input window, operand 0, single buffered']
    #allocation4 [shape = 's32[1]{0}', space=sflag, size = 0x4, scoped, tag = 'scoped memory for tpu_custom_call.1']
    #allocation5 [shape = 's32[1]{0}', space=sflag, size = 0x4, scoped, tag = 'scoped memory for tpu_custom_call.1']
    #allocation6 [shape = 'u8[16384]{0}', space=vmem, size = 0x4000, scoped, tag = 'input window, operand 1, single buffered']
    #allocation7 [shape = 's32[1]{0}', space=sflag, size = 0x4, scoped, tag = 'scoped memory for tpu_custom_call.1']
    #allocation8 [shape = 'u8[65536]{0}', space=vmem, size = 0x10000, scoped, tag = 'input window, operand 3, single buffered']
    #allocation9 [shape = 'u8[512]{0}', space=vmem, size = 0x400, scoped, tag = 'output window, operand 0, single buffered']
    %13 = vsyncpa [#allocation4], 0
    %14 = vsyncpa [#allocation7], 0
    %15 = vsyncpa [#allocation5], 0
    // Predicated region
    $region2: #{tpu_custom_call.1} parent=1 // pred_check
      _
    $region3: #{tpu_custom_call.1} parent=1 // pred_check_branch
      %17 = sbr.rel (0) target = $region5
    $region4: #{tpu_custom_call.1} parent=1 // pred_region
      %s19 = ssub.s32 128, 128
      %20 = vsyncadd [#allocation4], %s19
      %s22 = sshll.u32 [#allocation3], 4
      %s23 = int_to_ptr.vmem [resolvable:$true] %s22
      %25 = dma.hbm_to_vmem [thread:$0]  %s0, 128, %s23, [#allocation4]
    $region5: #{tpu_custom_call.1} parent=1 // pred_fallthru
      _
    // Predicated region
    $region6: #{tpu_custom_call.1} parent=1 // pred_check
      _
    $region7: #{tpu_custom_call.1} parent=1 // pred_check_branch
      %27 = sbr.rel (0) target = $region9
    $region8: #{tpu_custom_call.1} parent=1 // pred_region
      %s29 = ssub.s32 512, 512
      %30 = vsyncadd [#allocation7], %s29
      %s31 = sshll.u32 [#allocation6], 4
      %s32 = int_to_ptr.vmem [resolvable:$true] %s31
      %37 = dma.hbm_to_vmem [thread:$0]  %s1, 512, %s32, [#allocation7], 128, 128, 8
    $region9: #{tpu_custom_call.1} parent=1 // pred_fallthru
      _
    // Predicated region
    $region10: #{tpu_custom_call.1} parent=1 // pred_check
      _
    $region11: #{tpu_custom_call.1} parent=1 // pred_check_branch
      %39 = sbr.rel (0) target = $region13
    $region12: #{tpu_custom_call.1} parent=1 // pred_region
      _
    $region13: #{tpu_custom_call.1} parent=1 // pred_fallthru
      _
    // Predicated region
    $region14: #{tpu_custom_call.1} parent=1 // pred_check
      _
    $region15: #{tpu_custom_call.1} parent=1 // pred_check_branch
      %41 = sbr.rel (0) target = $region17
    $region16: #{tpu_custom_call.1} parent=1 // pred_region
      %s43 = ssub.s32 2048, 2048
      %44 = vsyncadd [#allocation7], %s43
      %s45 = sshll.u32 [#allocation8], 4
      %s46 = int_to_ptr.vmem [resolvable:$true] %s45
      %51 = dma.hbm_to_vmem [thread:$0]  %s3, 2048, %s46, [#allocation7], 64, 64, 4
    $region17: #{tpu_custom_call.1} parent=1 // pred_fallthru
      _
    // Predicated region
    $region18: #{tpu_custom_call.1} parent=1 // pred_check
      _
    $region19: #{tpu_custom_call.1} parent=1 // pred_check_branch
      %53 = sbr.rel (0) target = $region21
    $region20: #{tpu_custom_call.1} parent=1 // pred_region
      _
    $region21: #{tpu_custom_call.1} parent=1 // pred_fallthru
      _
    // Predicated region
    $region22: #{tpu_custom_call.1} parent=1 // pred_check
      _
    $region23: #{tpu_custom_call.1} parent=1 // pred_check_branch
      %55 = sbr.rel (0) target = $region25
    $region24: #{tpu_custom_call.1} parent=1 // pred_region
      _
    $region25: #{tpu_custom_call.1} parent=1 // pred_fallthru
      _
    // Predicated region
    $region26: #{tpu_custom_call.1} parent=1 // pred_check
      _
    $region27: #{tpu_custom_call.1} parent=1 // pred_check_branch
      %57 = sbr.rel (0) target = $region29
    $region28: #{tpu_custom_call.1} parent=1 // pred_region
      _
    $region29: #{tpu_custom_call.1} parent=1 // pred_fallthru
      _
    // Predicated region
    $region30: #{tpu_custom_call.1} parent=1 // pred_check
      _
    $region31: #{tpu_custom_call.1} parent=1 // pred_check_branch
      %59 = sbr.rel (0) target = $region33
    $region32: #{tpu_custom_call.1} parent=1 // pred_region
      %60 = dma.done [#allocation4], 128
    $region33: #{tpu_custom_call.1} parent=1 // pred_fallthru
      _
    // Predicated region
    $region34: #{tpu_custom_call.1} parent=1 // pred_check
      _
    $region35: #{tpu_custom_call.1} parent=1 // pred_check_branch
      %62 = sbr.rel (0) target = $region37
    $region36: #{tpu_custom_call.1} parent=1 // pred_region
      %63 = dma.done [#allocation7], 512
    $region37: #{tpu_custom_call.1} parent=1 // pred_fallthru
      _
    // Predicated region
    $region38: #{tpu_custom_call.1} parent=1 // pred_check
      _
    $region39: #{tpu_custom_call.1} parent=1 // pred_check_branch
      %65 = sbr.rel (0) target = $region41
    $region40: #{tpu_custom_call.1} parent=1 // pred_region
      %66 = dma.done [#allocation7], 2048
    $region41: #{tpu_custom_call.1} parent=1 // pred_fallthru
      _
    %v68 = vld [vmem:[#allocation3] sm:$0xff]
    %v69 = vpack.c.bf16 %v68, %v68
    %v70 = vld [vmem:[#allocation6] sm:$0xff]
    %v71 = vld [vmem:[#allocation6 + $0x8] sm:$0xff]
    %v72 = vld [vmem:[#allocation6 + $0x10] sm:$0xff]
    %v73 = vld [vmem:[#allocation6 + $0x18] sm:$0xff]
    %v74 = vld [vmem:[%s2] sm:$0x3]
    %v76 = vlaneseq
    %v77 = vshrl.u32 %v76, 7
    %v78 = vsub.s32 0, %v77
    %v79 = vrot.slane %v74, %v78
    %v80 = vlaneseq
    %v81 = vshrl.u32 %v80, 7
    %v82 = vsub.s32 1, %v81
    %v83 = vrot.slane %v74, %v82
    %v90 = vunpack.c.l.b16 %v70
    %v91 = vunpack.c.h.b16 %v70
    %v92 = vunpack.c.l.b16 %v71
    %v93 = vunpack.c.h.b16 %v71
    %v94 = vunpack.c.l.b16 %v72
    %v95 = vunpack.c.h.b16 %v72
    %v96 = vunpack.c.l.b16 %v73
    %v97 = vunpack.c.h.b16 %v73
    %v98 = vpack.c.b16 %v92, %v90
    %v99 = vpack.c.b16 %v93, %v91
    %v100 = vpack.c.b16 %v96, %v94
    %v101 = vpack.c.b16 %v97, %v95
    %vm106 = vcmask 261120
    %v108 = vsel %vm106, %v69, 0
    %110 = vmatprep.subr.bf16.mxu0 %v99
    %111 = vmatpush1.bf16.msra.mxu0 %v98
    %112 = vmatprep.subr.bf16.mxu0 %v101
    %113 = vmatpush1.bf16.msra.mxu0 %v100
    %114 = vmatprep.subr.bf16.mxu0 0
    %115 = vmatpush1.bf16.msra.mxu0 0
    %116 = vmatprep.subr.bf16.mxu0 0
    %117 = vmatpush1.bf16.msra.mxu0 0
    %118 = vmatprep.subr.bf16.mxu0 0
    %119 = vmatpush1.bf16.msra.mxu0 0
    %120 = vmatprep.subr.bf16.mxu0 0
    %121 = vmatpush1.bf16.msra.mxu0 0
    %122 = vmatprep.subr.bf16.mxu0 0
    %123 = vmatpush1.bf16.msra.mxu0 0
    %124 = vmatprep.subr.bf16.mxu0 0
    %125 = vmatpush1.bf16.msra.mxu0 0
    %126 = vmatprep.subr.bf16.mxu0 0
    %127 = vmatpush1.bf16.msra.mxu0 0
    %128 = vmatprep.subr.bf16.mxu0 0
    %129 = vmatpush1.bf16.msra.mxu0 0
    %130 = vmatprep.subr.bf16.mxu0 0
    %131 = vmatpush1.bf16.msra.mxu0 0
    %132 = vmatprep.subr.bf16.mxu0 0
    %133 = vmatpush1.bf16.msra.mxu0 0
    %134 = vmatprep.subr.bf16.mxu0 0
    %135 = vmatpush1.bf16.msra.mxu0 0
    %136 = vmatprep.subr.bf16.mxu0 0
    %137 = vmatpush1.bf16.msra.mxu0 0
    %138 = vmatprep.subr.bf16.mxu0 0
    %139 = vmatpush1.bf16.msra.mxu0 0
    %140 = vmatprep.subr.bf16.mxu0 0
    %141 = vmatpush1.bf16.msra.mxu0 0
    %142 = vmatprep.mubr.bf16.mxu0 0
    %143 = vmatmul.mubr.bf16.gmra.mrb[0].mxu0 %v108
    %v144 = vpop.f32.mrb[0].mxu0
    %v145 = vadd.f32 %v79, %v144
    %v146 = vpop.f32.mrb[0].mxu0
    %v147 = vadd.f32 %v83, %v146
    %v148 = vpop.f32.mrb[0].mxu0
    %v149 = vpop.f32.mrb[0].mxu0
    %150 = vdwg.mxu0
    %v151 = vmax.f32 %v145, 0.0
    %v152 = vmax.f32 %v147, 0.0
    %v153 = vpack.c.bf16 %v151, %v151
    %v154 = vpack.c.bf16 %v152, %v152
    %v155 = vld [vmem:[#allocation8] sm:$0xf]
    %v156 = vld [vmem:[#allocation8 + $0x4] sm:$0xf]
    %v157 = vld [vmem:[#allocation8 + $0x8] sm:$0xf]
    %v158 = vld [vmem:[#allocation8 + $0xc] sm:$0xf]
    %v159 = vld [vmem:[#allocation8 + $0x10] sm:$0xf]
    %v160 = vld [vmem:[#allocation8 + $0x14] sm:$0xf]
    %v161 = vld [vmem:[#allocation8 + $0x18] sm:$0xf]
    %v162 = vld [vmem:[#allocation8 + $0x1c] sm:$0xf]
    %v163 = vld [vmem:[#allocation8 + $0x20] sm:$0xf]
    %v164 = vld [vmem:[#allocation8 + $0x24] sm:$0xf]
    %v165 = vld [vmem:[#allocation8 + $0x28] sm:$0xf]
    %v166 = vld [vmem:[#allocation8 + $0x2c] sm:$0xf]
    %v167 = vld [vmem:[#allocation8 + $0x30] sm:$0xf]
    %v168 = vld [vmem:[#allocation8 + $0x34] sm:$0xf]
    %v169 = vld [vmem:[#allocation8 + $0x38] sm:$0xf]
    %v170 = vld [vmem:[#allocation8 + $0x3c] sm:$0xf]
    %v171 = vld [vmem:[#allocation8 + $0x40] sm:$0xf]
    %v172 = vld [vmem:[#allocation8 + $0x44] sm:$0xf]
    %v173 = vld [vmem:[#allocation8 + $0x48] sm:$0xf]
    %v174 = vld [vmem:[#allocation8 + $0x4c] sm:$0xf]
    %v175 = vld [vmem:[#allocation8 + $0x50] sm:$0xf]
    %v176 = vld [vmem:[#allocation8 + $0x54] sm:$0xf]
    %v177 = vld [vmem:[#allocation8 + $0x58] sm:$0xf]
    %v178 = vld [vmem:[#allocation8 + $0x5c] sm:$0xf]
    %v179 = vld [vmem:[#allocation8 + $0x60] sm:$0xf]
    %v180 = vld [vmem:[#allocation8 + $0x64] sm:$0xf]
    %v181 = vld [vmem:[#allocation8 + $0x68] sm:$0xf]
    %v182 = vld [vmem:[#allocation8 + $0x6c] sm:$0xf]
    %v183 = vld [vmem:[#allocation8 + $0x70] sm:$0xf]
    %v184 = vld [vmem:[#allocation8 + $0x74] sm:$0xf]
    %v185 = vld [vmem:[#allocation8 + $0x78] sm:$0xf]
    %v186 = vld [vmem:[#allocation8 + $0x7c] sm:$0xf]
    %v187 = vld [vmem:[%s4] sm:$0x1]
    %v189 = vlaneseq
    %v190 = vshrl.u32 %v189, 7
    %v191 = vsub.s32 0, %v190
    %v192 = vrot.slane %v187, %v191
    %v226 = vunpack.c.l.b16 %v155
    %v227 = vunpack.c.l.b16 %v156
    %v228 = vunpack.c.l.b16 %v157
    %v229 = vunpack.c.l.b16 %v158
    %v230 = vunpack.c.l.b16 %v159
    %v231 = vunpack.c.l.b16 %v160
    %v232 = vunpack.c.l.b16 %v161
    %v233 = vunpack.c.l.b16 %v162
    %v234 = vunpack.c.l.b16 %v163
    %v235 = vunpack.c.l.b16 %v164
    %v236 = vunpack.c.l.b16 %v165
    %v237 = vunpack.c.l.b16 %v166
    %v238 = vunpack.c.l.b16 %v167
    %v239 = vunpack.c.l.b16 %v168
    %v240 = vunpack.c.l.b16 %v169
    %v241 = vunpack.c.l.b16 %v170
    %v242 = vunpack.c.l.b16 %v171
    %v243 = vunpack.c.l.b16 %v172
    %v244 = vunpack.c.l.b16 %v173
    %v245 = vunpack.c.l.b16 %v174
    %v246 = vunpack.c.l.b16 %v175
    %v247 = vunpack.c.l.b16 %v176
    %v248 = vunpack.c.l.b16 %v177
    %v249 = vunpack.c.l.b16 %v178
    %v250 = vunpack.c.l.b16 %v179
    %v251 = vunpack.c.l.b16 %v180
    %v252 = vunpack.c.l.b16 %v181
    %v253 = vunpack.c.l.b16 %v182
    %v254 = vunpack.c.l.b16 %v183
    %v255 = vunpack.c.l.b16 %v184
    %v256 = vunpack.c.l.b16 %v185
    %v257 = vunpack.c.l.b16 %v186
    %v258 = vpack.c.b16 %v227, %v226
    %v259 = vpack.c.b16 %v229, %v228
    %v260 = vpack.c.b16 %v231, %v230
    %v261 = vpack.c.b16 %v233, %v232
    %v262 = vpack.c.b16 %v235, %v234
    %v263 = vpack.c.b16 %v237, %v236
    %v264 = vpack.c.b16 %v239, %v238
    %v265 = vpack.c.b16 %v241, %v240
    %v266 = vpack.c.b16 %v243, %v242
    %v267 = vpack.c.b16 %v245, %v244
    %v268 = vpack.c.b16 %v247, %v246
    %v269 = vpack.c.b16 %v249, %v248
    %v270 = vpack.c.b16 %v251, %v250
    %v271 = vpack.c.b16 %v253, %v252
    %v272 = vpack.c.b16 %v255, %v254
    %v273 = vpack.c.b16 %v257, %v256
    %290 = vmatprep.subr.bf16.mxu0 0
    %291 = vmatpush1.bf16.msra.mxu0 %v258
    %292 = vmatprep.subr.bf16.mxu0 0
    %293 = vmatpush1.bf16.msra.mxu0 %v259
    %294 = vmatprep.subr.bf16.mxu0 0
    %295 = vmatpush1.bf16.msra.mxu0 %v260
    %296 = vmatprep.subr.bf16.mxu0 0
    %297 = vmatpush1.bf16.msra.mxu0 %v261
    %298 = vmatprep.subr.bf16.mxu0 0
    %299 = vmatpush1.bf16.msra.mxu0 %v262
    %300 = vmatprep.subr.bf16.mxu0 0
    %301 = vmatpush1.bf16.msra.mxu0 %v263
    %302 = vmatprep.subr.bf16.mxu0 0
    %303 = vmatpush1.bf16.msra.mxu0 %v264
    %304 = vmatprep.subr.bf16.mxu0 0
    %305 = vmatpush1.bf16.msra.mxu0 %v265
    %306 = vmatprep.subr.bf16.mxu0 0
    %307 = vmatpush1.bf16.msra.mxu0 %v266
    %308 = vmatprep.subr.bf16.mxu0 0
    %309 = vmatpush1.bf16.msra.mxu0 %v267
    %310 = vmatprep.subr.bf16.mxu0 0
    %311 = vmatpush1.bf16.msra.mxu0 %v268
    %312 = vmatprep.subr.bf16.mxu0 0
    %313 = vmatpush1.bf16.msra.mxu0 %v269
    %314 = vmatprep.subr.bf16.mxu0 0
    %315 = vmatpush1.bf16.msra.mxu0 %v270
    %316 = vmatprep.subr.bf16.mxu0 0
    %317 = vmatpush1.bf16.msra.mxu0 %v271
    %318 = vmatprep.subr.bf16.mxu0 0
    %319 = vmatpush1.bf16.msra.mxu0 %v272
    %320 = vmatprep.subr.bf16.mxu0 0
    %321 = vmatpush1.bf16.msra.mxu0 %v273
    %322 = vmatprep.mubr.bf16.mxu0 %v154
    %323 = vmatmul.mubr.bf16.gmra.mrb[0].mxu0 %v153
    %v324 = vpop.f32.mrb[0].mxu0
    %v325 = vadd.f32 %v192, %v324
    %v326 = vpop.f32.mrb[0].mxu0
    %v327 = vpop.f32.mrb[0].mxu0
    %v328 = vpop.f32.mrb[0].mxu0
    %329 = vdwg.mxu0
    %v330 = vmax.f32 %v325, 0.0
    %v331 = vld [vmem:[%s5] sm:$0x1]
    %v332 = vpack.c.bf16 %v330, %v330
    %s333 = sld [smem:[#allocation2]]
    %v334 = vstv %s333
    %335 = vmatprep.subr.bf16.mxu0 0
    %336 = vmatpush1.bf16.xpose.msra.mxu0 %v332
    %337 = vmatprep.subr.bf16.mxu0 0
    %338 = vmatpush1.bf16.xpose.msra.mxu0 0
    %339 = vmatprep.subr.bf16.mxu0 0
    %340 = vmatpush1.bf16.xpose.msra.mxu0 0
    %341 = vmatprep.subr.bf16.mxu0 0
    %342 = vmatpush1.bf16.xpose.msra.mxu0 0
    %343 = vmatprep.subr.bf16.mxu0 0
    %344 = vmatpush1.bf16.xpose.msra.mxu0 0
    %345 = vmatprep.subr.bf16.mxu0 0
    %346 = vmatpush1.bf16.xpose.msra.mxu0 0
    %347 = vmatprep.subr.bf16.mxu0 0
    %348 = vmatpush1.bf16.xpose.msra.mxu0 0
    %349 = vmatprep.subr.bf16.mxu0 0
    %350 = vmatpush1.bf16.xpose.msra.mxu0 0
    %351 = vmatprep.subr.bf16.mxu0 0
    %352 = vmatpush1.bf16.xpose.msra.mxu0 0
    %353 = vmatprep.subr.bf16.mxu0 0
    %354 = vmatpush1.bf16.xpose.msra.mxu0 0
    %355 = vmatprep.subr.bf16.mxu0 0
    %356 = vmatpush1.bf16.xpose.msra.mxu0 0
    %357 = vmatprep.subr.bf16.mxu0 0
    %358 = vmatpush1.bf16.xpose.msra.mxu0 0
    %359 = vmatprep.subr.bf16.mxu0 0
    %360 = vmatpush1.bf16.xpose.msra.mxu0 0
    %361 = vmatprep.subr.bf16.mxu0 0
    %362 = vmatpush1.bf16.xpose.msra.mxu0 0
    %363 = vmatprep.subr.bf16.mxu0 0
    %364 = vmatpush1.bf16.xpose.msra.mxu0 0
    %365 = vmatprep.subr.bf16.mxu0 0
    %366 = vmatpush1.bf16.xpose.msra.mxu0 0
    %367 = vmatprep.mubr.bf16.mxu0 0
    %368 = vmatmul.mubr.bf16.gmra.mrb[0].mxu0 %v331
    %v369 = vpop.f32.mrb[0].mxu0
    %v370 = vadd.f32 %v334, %v369
    %v371 = vpop.f32.mrb[0].mxu0
    %v372 = vpop.f32.mrb[0].mxu0
    %v373 = vpop.f32.mrb[0].mxu0
    %374 = vdwg.mxu0
    %v375 = vsub.f32 0.0, %v370
    %v376 = vmul.f32 %v375, 1.442695
    %v377 = vpow.pop %v376
    %v378 = vadd.f32 %v377, 1.0
    %v379 = vrcp.pop %v378
    %vm380 = vcmask 57344
    %381 = vst.msk [vmem:[#allocation9] sm:$0x1] %vm380, %v379
    // Predicated region
    $region42: #{tpu_custom_call.1} parent=1 // pred_check
      _
    $region43: #{tpu_custom_call.1} parent=1 // pred_check_branch
      %383 = sbr.rel (0) target = $region45
    $region44: #{tpu_custom_call.1} parent=1 // pred_region
      %s385 = ssub.s32 16, 16
      %386 = vsyncadd [#allocation5], %s385
      %s388 = sshll.u32 [#allocation9], 4
      %s389 = int_to_ptr.vmem [resolvable:$true] %s388
      %391 = dma.vmem_to_hbm [thread:$0]  %s389, 16, %s7, [#allocation5]
    $region45: #{tpu_custom_call.1} parent=1 // pred_fallthru
      _
    // Predicated region
    $region46: #{tpu_custom_call.1} parent=1 // pred_check
      _
    $region47: #{tpu_custom_call.1} parent=1 // pred_check_branch
      %393 = sbr.rel (0) target = $region49
    $region48: #{tpu_custom_call.1} parent=1 // pred_region
      %394 = dma.done [#allocation5], 16
    $region49: #{tpu_custom_call.1} parent=1 // pred_fallthru
      _
    %395 = vsyncpa [#allocation4], 1
    %396 = vsyncpa [#allocation7], 1
    %397 = vsyncpa [#allocation5], 1

</llo_original>
